<compile_context>
chip_gen: v5e
topology: v5e:2x2
jax: 0.10.0
libtpu: 0.0.40
codegen_flags: <defaults>
</compile_context>

<pallas_src>
import jax
import jax.numpy as jnp
from jax.experimental import pallas as pl
from jax.experimental.pallas import tpu as pltpu

_BN_EPS = 1e-5


def _align128(n):
    return ((n + 127) // 128) * 128


def _bias_layout(L):
    """Lane-aligned offsets of the five biases inside one packed (1, N) row."""
    c1_off, c1_sz = 0, 16 * L
    c2_off, c2_sz = _align128(c1_off + c1_sz), 32 * L
    f1_off = _align128(c2_off + c2_sz)
    f2_off = f1_off + 128
    f3_off = f2_off + 128
    total = f3_off + 128
    return c1_off, c1_sz, c2_off, c2_sz, f1_off, f2_off, f3_off, total


# ----------------------------------------------------------------------------
# Fused kernel body (one batch tile per grid step; weights resident in VMEM).
# ----------------------------------------------------------------------------
def _make_forward_kernel(L):
    c1_off, c1_sz, c2_off, c2_sz, f1_off, f2_off, f3_off, _ = _bias_layout(L)

    def kernel(x_ref, c1w_ref, c2w_ref, f1w_ref, f2w_ref, f3w_ref, b_ref, o_ref):
        def dot(a, b):
            # Explicit precision choice (review): DEFAULT (bf16 MXU passes) for
            # speed; accumulation in f32.
            return jnp.dot(a, b, preferred_element_type=jnp.float32,
                           precision=jax.lax.Precision.DEFAULT)

        # conv1 (banded matmul) + folded bn1 + relu : (TB, L) -> (TB, 16L)
        h = jnp.maximum(dot(x_ref[...], c1w_ref[...])
                        + b_ref[:, c1_off:c1_off + c1_sz], 0.0)
        # conv2 (banded matmul) + folded bn2 + relu : (TB, 16L) -> (TB, 32L)
        h = jnp.maximum(dot(h, c2w_ref[...])
                        + b_ref[:, c2_off:c2_off + c2_sz], 0.0)
        # flatten is free (fc1 weight rows permuted at init); fc1 + relu
        h = jnp.maximum(dot(h, f1w_ref[...])
                        + b_ref[:, f1_off:f1_off + 128], 0.0)
        # dropout = identity (eval); fc2 + relu (output zero-padded to 128 lanes)
        h = jnp.maximum(dot(h, f2w_ref[...])
                        + b_ref[:, f2_off:f2_off + 128], 0.0)
        # dropout = identity (eval); fc3 (output zero-padded to 128 lanes)
        o_ref[...] = (dot(h, f3w_ref[...])
                      + b_ref[:, f3_off:f3_off + 128]).astype(o_ref.dtype)

    return kernel


def forward(params, x, *, batch_tile=256):
    """x: (B, input_dim) float32 -> logits (B, 2).

    One pallas_call with a 'parallel' batch grid; weights/biases stay
    VMEM-resident across all batch tiles (their index_map is constant).
    """
    B, L = x.shape
    tb = min(batch_tile, B)
    grid = (pl.cdiv(B, tb),)

    weights = (params["c1w"], params["c2w"], params["f1w"],
               params["f2w"], params["f3w"], params["bias"])

    out_padded = pl.pallas_call(
        _make_forward_kernel(L),
        out_shape=jax.ShapeDtypeStruct((B, 128), jnp.float32),
        grid=grid,
        in_specs=[pl.BlockSpec((tb, L), lambda i: (i, 0))] +
                 [pl.BlockSpec(w.shape, lambda i: (0, 0)) for w in weights],
        out_specs=pl.BlockSpec((tb, 128), lambda i: (i, 0)),
        compiler_params=pltpu.CompilerParams(
            dimension_semantics=("parallel",)),
    )(x, *weights)
    return out_padded[:, :2]


# ----------------------------------------------------------------------------
# One-time init-side rewrites (pure JAX, off the hot path).
# ----------------------------------------------------------------------------
def _conv1d_as_band_matrix(w_kio, L):
    """Exact Conv1d(k=3, padding=1) as a (L*IC, L*OC) banded block matrix.

    Activation layout: lane index = l*C + c (position-major, channel-minor).
    M[l_in*IC + ic, l_out*OC + oc] = w_kio[l_in - l_out + 1, ic, oc] (0 outside band).
    """
    K, IC, OC = w_kio.shape
    tap = jnp.arange(L)[:, None] - jnp.arange(L)[None, :] + 1        # (L_in, L_out)
    valid = (tap >= 0) & (tap < K)
    wblk = w_kio[jnp.clip(tap, 0, K - 1)]                            # (L, L, IC, OC)
    wblk = jnp.where(valid[:, :, None, None], wblk, 0.0)
    return jnp.transpose(wblk, (0, 2, 1, 3)).reshape(L * IC, L * OC)


def init_raw_params(input_dim, key):
    """Deterministic parameters in native PyTorch layouts (incl. real BN stats)."""
    L = input_dim
    ks = jax.random.split(key, 11)
    return {
        "conv1_w": 0.1 * jax.random.normal(ks[0], (16, 1, 3), jnp.float32),   # (oc, ic, k)
        "conv1_b": jnp.full((16,), 0.01, jnp.float32),
        "conv2_w": 0.1 * jax.random.normal(ks[1], (32, 16, 3), jnp.float32),  # (oc, ic, k)
        "conv2_b": jnp.full((32,), 0.01, jnp.float32),
        "fc1_w": 0.1 * jax.random.normal(ks[2], (128, 32 * L), jnp.float32),  # (out, in=c*L+l)
        "fc1_b": jnp.full((128,), 0.01, jnp.float32),
        "fc2_w": 0.1 * jax.random.normal(ks[3], (64, 128), jnp.float32),
        "fc2_b": jnp.full((64,), 0.01, jnp.float32),
        "fc3_w": 0.1 * jax.random.normal(ks[4], (2, 64), jnp.float32),
        "fc3_b": jnp.full((2,), 0.01, jnp.float32),
        # Non-trivial BatchNorm affine params + running stats (eval mode).
        "bn1_gamma": 1.0 + 0.1 * jax.random.normal(ks[5], (16,), jnp.float32),
        "bn1_beta": 0.1 * jax.random.normal(ks[6], (16,), jnp.float32),
        "bn1_mean": 0.1 * jax.random.normal(ks[7], (16,), jnp.float32),
        "bn1_var": 1.0 + 0.1 * jax.random.uniform(ks[8], (16,), jnp.float32),
        "bn2_gamma": 1.0 + 0.1 * jax.random.normal(ks[9], (32,), jnp.float32),
        "bn2_beta": 0.1 * jax.random.normal(ks[10], (32,), jnp.float32),
        "bn2_mean": jnp.zeros((32,), jnp.float32),
        "bn2_var": jnp.ones((32,), jnp.float32),
    }


def pack_params(raw, input_dim):
    """Fold BN (eval) into conv weights, build band matrices, permute fc1 rows,
    pad fc2/fc3 to 128 lanes, and pack all biases into one lane-aligned row."""
    L = input_dim

    # O(L^2) band-matrix guard (conv2 band is 2048*L^2 bytes in f32).
    band_bytes = (16 * L) * (32 * L) * 4
    if band_bytes > 8 * 1024 * 1024:
        # TODO(synk): for large input_dim replace the dense conv2 band with 3
        #             per-tap shifted matmuls (pltpu.roll / pl.ds) to avoid
        #             blowing VMEM (v7x: 64 MiB total).
        raise ValueError(f"conv2 band matrix too large for VMEM: {band_bytes} bytes")

    def bn_fold(gamma, beta, rmean, rvar):
        scale = gamma / jnp.sqrt(rvar + _BN_EPS)
        shift = beta - rmean * scale
        return scale, shift

    s1, t1 = bn_fold(raw["bn1_gamma"], raw["bn1_beta"], raw["bn1_mean"], raw["bn1_var"])
    s2, t2 = bn_fold(raw["bn2_gamma"], raw["bn2_beta"], raw["bn2_mean"], raw["bn2_var"])

    # bn(conv(x)) = x @ (w * scale) + (b * scale + shift)
    w1_kio = jnp.transpose(raw["conv1_w"], (2, 1, 0)) * s1           # (3, 1, 16)
    b1 = raw["conv1_b"] * s1 + t1
    w2_kio = jnp.transpose(raw["conv2_w"], (2, 1, 0)) * s2           # (3, 16, 32)
    b2 = raw["conv2_b"] * s2 + t2

    # fc1 row permutation: torch flatten index c*L + l -> our lane index l*32 + c.
    perm = (jnp.arange(32)[None, :] * L + jnp.arange(L)[:, None]).reshape(L * 32)

    # fc2 / fc3 zero-padded to 128 output lanes (lane-dense activations & store).
    f2w = jnp.zeros((128, 128), jnp.float32).at[:, :64].set(raw["fc2_w"].T)
    f3w = jnp.zeros((128, 128), jnp.float32).at[:64, :2].set(raw["fc3_w"].T)

    # Pack all biases into one lane-aligned row buffer (fewer operand DMAs).
    c1_off, c1_sz, c2_off, c2_sz, f1_off, f2_off, f3_off, total = _bias_layout(L)
    bias = jnp.zeros((1, total), jnp.float32)
    bias = bias.at[0, c1_off:c1_off + c1_sz].set(jnp.tile(b1, (L,)))
    bias = bias.at[0, c2_off:c2_off + c2_sz].set(jnp.tile(b2, (L,)))
    bias = bias.at[0, f1_off:f1_off + 128].set(raw["fc1_b"])
    bias = bias.at[0, f2_off:f2_off + 64].set(raw["fc2_b"])
    bias = bias.at[0, f3_off:f3_off + 2].set(raw["fc3_b"])

    return {
        "c1w": _conv1d_as_band_matrix(w1_kio, L),                    # (L,   16L)
        "c2w": _conv1d_as_band_matrix(w2_kio, L),                    # (16L, 32L)
        "f1w": raw["fc1_w"].T[perm],                                 # (32L, 128)
        "f2w": f2w,                                                  # (128, 128)
        "f3w": f3w,                                                  # (128, 128)
        "bias": bias,                                                # (1, total)
    }


# ----------------------------------------------------------------------------
# Pure-JAX reference (mirrors the PyTorch module in eval mode) for validation.
# ----------------------------------------------------------------------------
def reference_forward(raw, x):
    B, L = x.shape

    def conv1d(x_ncl, w, b):                                  # w: (oc, ic, 3), pad=1
        xp = jnp.pad(x_ncl, ((0, 0), (0, 0), (1, 1)))
        cols = jnp.stack([xp[:, :, k:k + L] for k in range(3)], axis=-1)  # (B, ic, L, 3)
        return jnp.einsum("bclk,ock->bol", cols, w,
                          precision=jax.lax.Precision.HIGHEST) + b[None, :, None]

    def bn(h, gamma, beta, mean, var):
        inv = gamma / jnp.sqrt(var + _BN_EPS)
        return (h - mean[None, :, None]) * inv[None, :, None] + beta[None, :, None]

    h = jax.nn.relu(bn(conv1d(x[:, None, :], raw["conv1_w"], raw["conv1_b"]),
                       raw["bn1_gamma"], raw["bn1_beta"], raw["bn1_mean"], raw["bn1_var"]))
    h = jax.nn.relu(bn(conv1d(h, raw["conv2_w"], raw["conv2_b"]),
                       raw["bn2_gamma"], raw["bn2_beta"], raw["bn2_mean"], raw["bn2_var"]))
    flat = h.reshape(B, -1)                                   # (B, 32*L), channel-major
    mm = lambda a, b: jnp.dot(a, b, precision=jax.lax.Precision.HIGHEST)
    h = jax.nn.relu(mm(flat, raw["fc1_w"].T) + raw["fc1_b"])
    h = jax.nn.relu(mm(h, raw["fc2_w"].T) + raw["fc2_b"])
    return mm(h, raw["fc3_w"].T) + raw["fc3_b"]


if __name__ == "__main__":
    INPUT_DIM = 16
    key = jax.random.PRNGKey(0)
    pkey, xkey1, xkey2 = jax.random.split(key, 3)

    raw = init_raw_params(INPUT_DIM, pkey)
    params = pack_params(raw, INPUT_DIM)

    fwd = jax.jit(forward, static_argnames=("batch_tile",))

    # 1) Small batch (single grid step), matches the module's typical use.
    x_small = jax.random.normal(xkey1, (8, INPUT_DIM), jnp.float32)
    out_small = jax.block_until_ready(fwd(params, x_small))
    assert out_small.shape == (8, 2), out_small.shape
    assert bool(jnp.all(jnp.isfinite(out_small)))
    ref_small = reference_forward(raw, x_small)
    assert bool(jnp.allclose(out_small, ref_small, atol=5e-2, rtol=5e-2)), (
        float(jnp.max(jnp.abs(out_small - ref_small))))

    # 2) Titanic-eval-sized batch: multi-step parallel batch grid (TB=256);
    #    weights stay VMEM-resident across tiles, edge tile masked by Pallas.
    x_big = jax.random.normal(xkey2, (891, INPUT_DIM), jnp.float32)
    out_big = jax.block_until_ready(fwd(params, x_big))
    assert out_big.shape == (891, 2), out_big.shape
    assert bool(jnp.all(jnp.isfinite(out_big)))
    ref_big = reference_forward(raw, x_big)
    assert bool(jnp.allclose(out_big, ref_big, atol=5e-2, rtol=5e-2)), (
        float(jnp.max(jnp.abs(out_big - ref_big))))

    print("KERNEL_OK")
</pallas_src>

<mosaic_0001>
module attributes {stable_mosaic.version = 11 : i64} {
  func.func @kernel(%arg0: i32, %arg1: memref<8x16xf32, #tpu.memory_space<vmem>>, %arg2: memref<16x256xf32, #tpu.memory_space<vmem>>, %arg3: memref<256x512xf32, #tpu.memory_space<vmem>>, %arg4: memref<512x128xf32, #tpu.memory_space<vmem>>, %arg5: memref<128x128xf32, #tpu.memory_space<vmem>>, %arg6: memref<128x128xf32, #tpu.memory_space<vmem>>, %arg7: memref<1x1152xf32, #tpu.memory_space<vmem>>, %arg8: memref<8x128xf32, #tpu.memory_space<vmem>>) attributes {dimension_semantics = [#tpu.dimension_semantics<parallel>], iteration_bounds = array<i64: 1>, scalar_prefetch = 0 : i64, scratch_operands = 0 : i64, tpu.core_type = #tpu.core_type<tc>, window_params = [{transform_indices = @transform_0, window_bounds = array<i64: 8, 16>}, {pipeline_mode = #tpu.pipeline_mode<synchronous>, transform_indices = @transform_1, window_bounds = array<i64: 16, 256>}, {pipeline_mode = #tpu.pipeline_mode<synchronous>, transform_indices = @transform_2, window_bounds = array<i64: 256, 512>}, {pipeline_mode = #tpu.pipeline_mode<synchronous>, transform_indices = @transform_3, window_bounds = array<i64: 512, 128>}, {pipeline_mode = #tpu.pipeline_mode<synchronous>, transform_indices = @transform_4, window_bounds = array<i64: 128, 128>}, {pipeline_mode = #tpu.pipeline_mode<synchronous>, transform_indices = @transform_5, window_bounds = array<i64: 128, 128>}, {pipeline_mode = #tpu.pipeline_mode<synchronous>, transform_indices = @transform_6, window_bounds = array<i64: 1, 1152>}, {transform_indices = @transform_7, window_bounds = array<i64: 8, 128>}]} {
    %c0 = arith.constant 0 : index
    %c0_0 = arith.constant 0 : index
    %0 = vector.load %arg1[%c0, %c0_0] : memref<8x16xf32, #tpu.memory_space<vmem>>, vector<8x16xf32>
    %c0_1 = arith.constant 0 : index
    %c0_2 = arith.constant 0 : index
    %1 = vector.load %arg2[%c0_1, %c0_2] : memref<16x256xf32, #tpu.memory_space<vmem>>, vector<16x256xf32>
    %cst = arith.constant dense<0.000000e+00> : vector<8x256xf32>
    %2 = tpu.matmul %0, %1, %cst {dimension_numbers = #tpu.dot_dimension_numbers<[1], [0], [0], [1], [0, 0, 1, 1], [], []>} : vector<8x16xf32>, vector<16x256xf32>, vector<8x256xf32> -> vector<8x256xf32>
    %c0_3 = arith.constant 0 : index
    %c0_4 = arith.constant 0 : index
    %3 = vector.load %arg7[%c0_3, %c0_4] : memref<1x1152xf32, #tpu.memory_space<vmem>>, vector<1x256xf32>
    %4 = vector.broadcast %3 : vector<1x256xf32> to vector<8x256xf32>
    %5 = arith.addf %2, %4 : vector<8x256xf32>
    %cst_5 = arith.constant 0.000000e+00 : f32
    %6 = vector.broadcast %cst_5 : f32 to vector<8x256xf32>
    %7 = arith.maximumf %5, %6 : vector<8x256xf32>
    %c0_6 = arith.constant 0 : index
    %c0_7 = arith.constant 0 : index
    %8 = vector.load %arg3[%c0_6, %c0_7] : memref<256x512xf32, #tpu.memory_space<vmem>>, vector<256x512xf32>
    %cst_8 = arith.constant dense<0.000000e+00> : vector<8x512xf32>
    %9 = tpu.matmul %7, %8, %cst_8 {dimension_numbers = #tpu.dot_dimension_numbers<[1], [0], [0], [1], [0, 0, 1, 1], [], []>} : vector<8x256xf32>, vector<256x512xf32>, vector<8x512xf32> -> vector<8x512xf32>
    %c0_9 = arith.constant 0 : index
    %c256 = arith.constant 256 : index
    %10 = vector.load %arg7[%c0_9, %c256] : memref<1x1152xf32, #tpu.memory_space<vmem>>, vector<1x512xf32>
    %11 = vector.broadcast %10 : vector<1x512xf32> to vector<8x512xf32>
    %12 = arith.addf %9, %11 : vector<8x512xf32>
    %cst_10 = arith.constant 0.000000e+00 : f32
    %13 = vector.broadcast %cst_10 : f32 to vector<8x512xf32>
    %14 = arith.maximumf %12, %13 : vector<8x512xf32>
    %c0_11 = arith.constant 0 : index
    %c0_12 = arith.constant 0 : index
    %15 = vector.load %arg4[%c0_11, %c0_12] : memref<512x128xf32, #tpu.memory_space<vmem>>, vector<512x128xf32>
    %cst_13 = arith.constant dense<0.000000e+00> : vector<8x128xf32>
    %16 = tpu.matmul %14, %15, %cst_13 {dimension_numbers = #tpu.dot_dimension_numbers<[1], [0], [0], [1], [0, 0, 1, 1], [], []>} : vector<8x512xf32>, vector<512x128xf32>, vector<8x128xf32> -> vector<8x128xf32>
    %c0_14 = arith.constant 0 : index
    %c768 = arith.constant 768 : index
    %17 = vector.load %arg7[%c0_14, %c768] : memref<1x1152xf32, #tpu.memory_space<vmem>>, vector<1x128xf32>
    %18 = vector.broadcast %17 : vector<1x128xf32> to vector<8x128xf32>
    %19 = arith.addf %16, %18 : vector<8x128xf32>
    %cst_15 = arith.constant 0.000000e+00 : f32
    %20 = vector.broadcast %cst_15 : f32 to vector<8x128xf32>
    %21 = arith.maximumf %19, %20 : vector<8x128xf32>
    %c0_16 = arith.constant 0 : index
    %c0_17 = arith.constant 0 : index
    %22 = vector.load %arg5[%c0_16, %c0_17] : memref<128x128xf32, #tpu.memory_space<vmem>>, vector<128x128xf32>
    %cst_18 = arith.constant dense<0.000000e+00> : vector<8x128xf32>
    %23 = tpu.matmul %21, %22, %cst_18 {dimension_numbers = #tpu.dot_dimension_numbers<[1], [0], [0], [1], [0, 0, 1, 1], [], []>} : vector<8x128xf32>, vector<128x128xf32>, vector<8x128xf32> -> vector<8x128xf32>
    %c0_19 = arith.constant 0 : index
    %c896 = arith.constant 896 : index
    %24 = vector.load %arg7[%c0_19, %c896] : memref<1x1152xf32, #tpu.memory_space<vmem>>, vector<1x128xf32>
    %25 = vector.broadcast %24 : vector<1x128xf32> to vector<8x128xf32>
    %26 = arith.addf %23, %25 : vector<8x128xf32>
    %cst_20 = arith.constant 0.000000e+00 : f32
    %27 = vector.broadcast %cst_20 : f32 to vector<8x128xf32>
    %28 = arith.maximumf %26, %27 : vector<8x128xf32>
    %c0_21 = arith.constant 0 : index
    %c0_22 = arith.constant 0 : index
    %29 = vector.load %arg6[%c0_21, %c0_22] : memref<128x128xf32, #tpu.memory_space<vmem>>, vector<128x128xf32>
    %cst_23 = arith.constant dense<0.000000e+00> : vector<8x128xf32>
    %30 = tpu.matmul %28, %29, %cst_23 {dimension_numbers = #tpu.dot_dimension_numbers<[1], [0], [0], [1], [0, 0, 1, 1], [], []>} : vector<8x128xf32>, vector<128x128xf32>, vector<8x128xf32> -> vector<8x128xf32>
    %c0_24 = arith.constant 0 : index
    %c1024 = arith.constant 1024 : index
    %31 = vector.load %arg7[%c0_24, %c1024] : memref<1x1152xf32, #tpu.memory_space<vmem>>, vector<1x128xf32>
    %32 = vector.broadcast %31 : vector<1x128xf32> to vector<8x128xf32>
    %33 = arith.addf %30, %32 : vector<8x128xf32>
    %c0_25 = arith.constant 0 : index
    %c0_26 = arith.constant 0 : index
    %34 = vector.load %arg8[%c0_25, %c0_26] : memref<8x128xf32, #tpu.memory_space<vmem>>, vector<8x128xf32>
    tpu.vector_store %arg8[%c0_25, %c0_26], %33 {strides = array<i32>} : memref<8x128xf32, #tpu.memory_space<vmem>>, vector<8x128xf32>,
    return
  }
  func.func @transform_0(%arg0: i32) -> (i32, i32) {
    %c0_i32 = arith.constant 0 : i32
    %c0_i32_0 = arith.constant 0 : i32
    return %arg0, %c0_i32 : i32, i32
  }
  func.func @transform_1(%arg0: i32) -> (i32, i32) {
    %c0_i32 = arith.constant 0 : i32
    %c0_i32_0 = arith.constant 0 : i32
    %c0_i32_1 = arith.constant 0 : i32
    return %c0_i32, %c0_i32_0 : i32, i32
  }
  func.func @transform_2(%arg0: i32) -> (i32, i32) {
    %c0_i32 = arith.constant 0 : i32
    %c0_i32_0 = arith.constant 0 : i32
    %c0_i32_1 = arith.constant 0 : i32
    return %c0_i32, %c0_i32_0 : i32, i32
  }
  func.func @transform_3(%arg0: i32) -> (i32, i32) {
    %c0_i32 = arith.constant 0 : i32
    %c0_i32_0 = arith.constant 0 : i32
    %c0_i32_1 = arith.constant 0 : i32
    return %c0_i32, %c0_i32_0 : i32, i32
  }
  func.func @transform_4(%arg0: i32) -> (i32, i32) {
    %c0_i32 = arith.constant 0 : i32
    %c0_i32_0 = arith.constant 0 : i32
    %c0_i32_1 = arith.constant 0 : i32
    return %c0_i32, %c0_i32_0 : i32, i32
  }
  func.func @transform_5(%arg0: i32) -> (i32, i32) {
    %c0_i32 = arith.constant 0 : i32
    %c0_i32_0 = arith.constant 0 : i32
    %c0_i32_1 = arith.constant 0 : i32
    return %c0_i32, %c0_i32_0 : i32, i32
  }
  func.func @transform_6(%arg0: i32) -> (i32, i32) {
    %c0_i32 = arith.constant 0 : i32
    %c0_i32_0 = arith.constant 0 : i32
    %c0_i32_1 = arith.constant 0 : i32
    return %c0_i32, %c0_i32_0 : i32, i32
  }
  func.func @transform_7(%arg0: i32) -> (i32, i32) {
    %c0_i32 = arith.constant 0 : i32
    %c0_i32_0 = arith.constant 0 : i32
    return %arg0, %c0_i32 : i32, i32
  }
}

</mosaic_0001>

<llo_original>
// kernel: forward.1
$region0: #{forward.1}
  #allocation0 [shape = 'u32[]', space=smem, size = 0x4, offset = 0x4, fixed_abs, tag = 'smem constant byte address 0x4 - core index']
  #allocation1 [shape = 'u32[72,128]{1,0:T(1,128)}', space=vmem, size = 0x9000, scoped, tag = 'internal scratch']
  %s0 = inlined_call_operand.hbm [shape: f32[8,16], index: 0, kind: input, shape index: {}]
  %s1 = inlined_call_operand.hbm [shape: f32[16,256], index: 1, kind: input, shape index: {}]
  %s2 = inlined_call_operand.hbm [shape: f32[256,512], index: 2, kind: input, shape index: {}]
  %s3 = inlined_call_operand.hbm [shape: f32[512,128], index: 3, kind: input, shape index: {}]
  %s4 = inlined_call_operand.hbm [shape: f32[128,128], index: 4, kind: input, shape index: {}]
  %s5 = inlined_call_operand.hbm [shape: f32[128,128], index: 5, kind: input, shape index: {}]
  %s6 = inlined_call_operand.hbm [shape: f32[1,1152], index: 6, kind: input, shape index: {}]
  %s7 = inlined_call_operand.vmem [shape: f32[8,128], index: 7, kind: output, shape index: {}]
  %s8 = sld [smem:[#allocation0]]
  $region66: #{forward.1} parent=0
    _
  %s10 = ssub.s32 1, %s8
  %s11 = scalar_select 0, %s10, %s8
  $region1: #{forward.1} parent=0
    #allocation2 [shape = 'u8[4096]{0}', space=vmem, size = 0x1000, scoped, tag = 'input window, operand 0, single buffered']
    #allocation3 [shape = 's32[1]{0}', space=sflag, size = 0x4, scoped, tag = 'scoped memory for forward.1']
    #allocation4 [shape = 'u8[16384]{0}', space=vmem, size = 0x4000, scoped, tag = 'input window, operand 1, single buffered']
    #allocation5 [shape = 's32[1]{0}', space=sflag, size = 0x4, scoped, tag = 'scoped memory for forward.1']
    #allocation6 [shape = 'u8[524288]{0}', space=vmem, size = 0x80000, scoped, tag = 'input window, operand 2, single buffered']
    #allocation7 [shape = 'u8[262144]{0}', space=vmem, size = 0x40000, scoped, tag = 'input window, operand 3, single buffered']
    #allocation8 [shape = 's32[1]{0}', space=sflag, size = 0x4, scoped, tag = 'scoped memory for forward.1']
    #allocation9 [shape = 'u8[65536]{0}', space=vmem, size = 0x10000, scoped, tag = 'input window, operand 4, single buffered']
    #allocation10 [shape = 'u8[65536]{0}', space=vmem, size = 0x10000, scoped, tag = 'input window, operand 5, single buffered']
    #allocation11 [shape = 's32[1]{0}', space=sflag, size = 0x4, scoped, tag = 'scoped memory for forward.1']
    #allocation12 [shape = 'u8[4608]{0}', space=vmem, size = 0x1400, scoped, tag = 'input window, operand 6, single buffered']
    %12 = vsyncpa [#allocation3], 0
    %13 = vsyncpa [#allocation5], 0
    %14 = vsyncpa [#allocation8], 0
    %15 = vsyncpa [#allocation11], 0
    // Predicated region
    $region2: #{forward.1} parent=1 // pred_check
      _
    $region3: #{forward.1} parent=1 // pred_check_branch
      %17 = sbr.rel (0) target = $region5
    $region4: #{forward.1} parent=1 // pred_region
      %19 = vsyncadd [#allocation3], 0
      %s21 = sshll.u32 %s0, 4
      %s22 = int_to_ptr.hbm [resolvable:$true] %s21
      %s23 = sshll.u32 [#allocation2], 4
      %s24 = int_to_ptr.vmem [resolvable:$true] %s23
      %26 = dma.hbm_to_vmem [thread:$0]  %s22, 128, %s24, [#allocation3]
    $region5: #{forward.1} parent=1 // pred_fallthru
      _
    // Predicated region
    $region6: #{forward.1} parent=1 // pred_check
      _
    $region7: #{forward.1} parent=1 // pred_check_branch
      %28 = sbr.rel (0) target = $region9
    $region8: #{forward.1} parent=1 // pred_region
      %30 = vsyncadd [#allocation5], 0
      %s31 = sshll.u32 %s1, 4
      %s32 = int_to_ptr.hbm [resolvable:$true] %s31
      %s33 = sshll.u32 [#allocation4], 4
      %s34 = int_to_ptr.vmem [resolvable:$true] %s33
      %39 = dma.hbm_to_vmem [thread:$0]  %s32, 512, %s34, [#allocation5], 256, 256, 16
    $region9: #{forward.1} parent=1 // pred_fallthru
      _
    // Predicated region
    $region10: #{forward.1} parent=1 // pred_check
      _
    $region11: #{forward.1} parent=1 // pred_check_branch
      %41 = sbr.rel (0) target = $region13
    $region12: #{forward.1} parent=1 // pred_region
      %43 = vsyncadd [#allocation5], 0
      %s44 = sshll.u32 %s2, 4
      %s45 = int_to_ptr.hbm [resolvable:$true] %s44
      %s46 = sshll.u32 [#allocation6], 4
      %s47 = int_to_ptr.vmem [resolvable:$true] %s46
      %52 = dma.hbm_to_vmem [thread:$0]  %s45, 16384, %s47, [#allocation5], 512, 512, 32
    $region13: #{forward.1} parent=1 // pred_fallthru
      _
    // Predicated region
    $region14: #{forward.1} parent=1 // pred_check
      _
    $region15: #{forward.1} parent=1 // pred_check_branch
      %54 = sbr.rel (0) target = $region17
    $region16: #{forward.1} parent=1 // pred_region
      %56 = vsyncadd [#allocation8], 0
      %s57 = sshll.u32 %s3, 4
      %s58 = int_to_ptr.hbm [resolvable:$true] %s57
      %s59 = sshll.u32 [#allocation7], 4
      %s60 = int_to_ptr.vmem [resolvable:$true] %s59
      %65 = dma.hbm_to_vmem [thread:$0]  %s58, 8192, %s60, [#allocation8], 128, 128, 8
    $region17: #{forward.1} parent=1 // pred_fallthru
      _
    // Predicated region
    $region18: #{forward.1} parent=1 // pred_check
      _
    $region19: #{forward.1} parent=1 // pred_check_branch
      %67 = sbr.rel (0) target = $region21
    $region20: #{forward.1} parent=1 // pred_region
      %69 = vsyncadd [#allocation8], 0
      %s70 = sshll.u32 %s4, 4
      %s71 = int_to_ptr.hbm [resolvable:$true] %s70
      %s72 = sshll.u32 [#allocation9], 4
      %s73 = int_to_ptr.vmem [resolvable:$true] %s72
      %78 = dma.hbm_to_vmem [thread:$0]  %s71, 2048, %s73, [#allocation8], 128, 128, 8
    $region21: #{forward.1} parent=1 // pred_fallthru
      _
    // Predicated region
    $region22: #{forward.1} parent=1 // pred_check
      _
    $region23: #{forward.1} parent=1 // pred_check_branch
      %80 = sbr.rel (0) target = $region25
    $region24: #{forward.1} parent=1 // pred_region
      %82 = vsyncadd [#allocation11], 0
      %s83 = sshll.u32 %s5, 4
      %s84 = int_to_ptr.hbm [resolvable:$true] %s83
      %s85 = sshll.u32 [#allocation10], 4
      %s86 = int_to_ptr.vmem [resolvable:$true] %s85
      %91 = dma.hbm_to_vmem [thread:$0]  %s84, 2048, %s86, [#allocation11], 128, 128, 8
    $region25: #{forward.1} parent=1 // pred_fallthru
      _
    // Predicated region
    $region26: #{forward.1} parent=1 // pred_check
      _
    $region27: #{forward.1} parent=1 // pred_check_branch
      %93 = sbr.rel (0) target = $region29
    $region28: #{forward.1} parent=1 // pred_region
      %95 = vsyncadd [#allocation11], 0
      %s97 = sshll.u32 %s6, 4
      %s98 = int_to_ptr.hbm [resolvable:$true] %s97
      %s99 = sshll.u32 [#allocation12], 4
      %s100 = int_to_ptr.vmem [resolvable:$true] %s99
      %102 = dma.hbm_to_vmem [thread:$0]  %s98, 144, %s100, [#allocation11]
    $region29: #{forward.1} parent=1 // pred_fallthru
      _
    // Predicated region
    $region30: #{forward.1} parent=1 // pred_check
      _
    $region31: #{forward.1} parent=1 // pred_check_branch
      %104 = sbr.rel (0) target = $region33
    $region32: #{forward.1} parent=1 // pred_region
      %106 = dma.done [#allocation3], 128
    $region33: #{forward.1} parent=1 // pred_fallthru
      _
    // Predicated region
    $region34: #{forward.1} parent=1 // pred_check
      _
    $region35: #{forward.1} parent=1 // pred_check_branch
      %108 = sbr.rel (0) target = $region37
    $region36: #{forward.1} parent=1 // pred_region
      %110 = dma.done [#allocation5], 512
    $region37: #{forward.1} parent=1 // pred_fallthru
      _
    // Predicated region
    $region38: #{forward.1} parent=1 // pred_check
      _
    $region39: #{forward.1} parent=1 // pred_check_branch
      %112 = sbr.rel (0) target = $region41
    $region40: #{forward.1} parent=1 // pred_region
      %114 = dma.done [#allocation5], 16384
    $region41: #{forward.1} parent=1 // pred_fallthru
      _
    // Predicated region
    $region42: #{forward.1} parent=1 // pred_check
      _
    $region43: #{forward.1} parent=1 // pred_check_branch
      %116 = sbr.rel (0) target = $region45
    $region44: #{forward.1} parent=1 // pred_region
      %118 = dma.done [#allocation8], 8192
    $region45: #{forward.1} parent=1 // pred_fallthru
      _
    // Predicated region
    $region46: #{forward.1} parent=1 // pred_check
      _
    $region47: #{forward.1} parent=1 // pred_check_branch
      %120 = sbr.rel (0) target = $region49
    $region48: #{forward.1} parent=1 // pred_region
      %122 = dma.done [#allocation8], 2048
    $region49: #{forward.1} parent=1 // pred_fallthru
      _
    // Predicated region
    $region50: #{forward.1} parent=1 // pred_check
      _
    $region51: #{forward.1} parent=1 // pred_check_branch
      %124 = sbr.rel (0) target = $region53
    $region52: #{forward.1} parent=1 // pred_region
      %126 = dma.done [#allocation11], 2048
    $region53: #{forward.1} parent=1 // pred_fallthru
      _
    // Predicated region
    $region54: #{forward.1} parent=1 // pred_check
      _
    $region55: #{forward.1} parent=1 // pred_check_branch
      %128 = sbr.rel (0) target = $region57
    $region56: #{forward.1} parent=1 // pred_region
      %130 = dma.done [#allocation11], 144
    $region57: #{forward.1} parent=1 // pred_fallthru
      _
    %v131 = vld [vmem:[#allocation2] sm:$0xff]
    %v132 = vld [vmem:[#allocation4] sm:$0xff]
    %v133 = vld [vmem:[#allocation4 + $0x8] sm:$0xff]
    %v134 = vld [vmem:[#allocation4 + $0x10] sm:$0xff]
    %v135 = vld [vmem:[#allocation4 + $0x18] sm:$0xff]
    %v136 = vld [vmem:[#allocation12] sm:$0x3]
    %v138 = vperm.slane %v136, 0
    %v139 = vperm.slane %v136, 1
    %vm142 = vcmask 130048
    %v144 = vsel %vm142, %v131, 0
    %146 = vmatpush.msra.mxu0 0.0
    %147 = vmatpush.msra.mxu0 0.0
    %148 = vmatpush.msra.mxu0 0.0
    %149 = vmatpush.msra.mxu0 0.0
    %150 = vmatpush.msra.mxu0 0.0
    %151 = vmatpush.msra.mxu0 0.0
    %152 = vmatpush.msra.mxu0 0.0
    %153 = vmatpush.msra.mxu0 0.0
    %154 = vmatpush.msra.mxu0 0.0
    %155 = vmatpush.msra.mxu0 0.0
    %156 = vmatpush.msra.mxu0 0.0
    %157 = vmatpush.msra.mxu0 0.0
    %158 = vmatpush.msra.mxu0 0.0
    %159 = vmatpush.msra.mxu0 0.0
    %160 = vmatpush.msra.mxu0 %v134
    %161 = vmatpush.msra.mxu0 %v132
    %162 = vmatmul.f32.gmra.mxu0 %v144
    %v163 = vpop.f32.mrf.mxu0
    %v164 = vadd.f32 %v138, %v163
    %165 = vdwg.mxu0
    %166 = vmatpush.msra.mxu0 0.0
    %167 = vmatpush.msra.mxu0 0.0
    %168 = vmatpush.msra.mxu0 0.0
    %169 = vmatpush.msra.mxu0 0.0
    %170 = vmatpush.msra.mxu0 0.0
    %171 = vmatpush.msra.mxu0 0.0
    %172 = vmatpush.msra.mxu0 0.0
    %173 = vmatpush.msra.mxu0 0.0
    %174 = vmatpush.msra.mxu0 0.0
    %175 = vmatpush.msra.mxu0 0.0
    %176 = vmatpush.msra.mxu0 0.0
    %177 = vmatpush.msra.mxu0 0.0
    %178 = vmatpush.msra.mxu0 0.0
    %179 = vmatpush.msra.mxu0 0.0
    %180 = vmatpush.msra.mxu0 %v135
    %181 = vmatpush.msra.mxu0 %v133
    %182 = vmatmul.f32.gmra.mxu0 %v144
    %v183 = vpop.f32.mrf.mxu0
    %v184 = vadd.f32 %v139, %v183
    %185 = vdwg.mxu0
    %v186 = vmax.f32 %v164, 0.0
    %v187 = vmax.f32 %v184, 0.0
    %v188 = vld [vmem:[#allocation6] sm:$0xff]
    %v189 = vld [vmem:[#allocation6 + $0x8] sm:$0xff]
    %v190 = vld [vmem:[#allocation6 + $0x10] sm:$0xff]
    %v191 = vld [vmem:[#allocation6 + $0x18] sm:$0xff]
    %v192 = vld [vmem:[#allocation6 + $0x20] sm:$0xff]
    %v193 = vld [vmem:[#allocation6 + $0x28] sm:$0xff]
    %v194 = vld [vmem:[#allocation6 + $0x30] sm:$0xff]
    %v195 = vld [vmem:[#allocation6 + $0x38] sm:$0xff]
    %v196 = vld [vmem:[#allocation6 + $0x40] sm:$0xff]
    %v197 = vld [vmem:[#allocation6 + $0x48] sm:$0xff]
    %v198 = vld [vmem:[#allocation6 + $0x50] sm:$0xff]
    %v199 = vld [vmem:[#allocation6 + $0x58] sm:$0xff]
    %v200 = vld [vmem:[#allocation6 + $0x60] sm:$0xff]
    %v201 = vld [vmem:[#allocation6 + $0x68] sm:$0xff]
    %v202 = vld [vmem:[#allocation6 + $0x70] sm:$0xff]
    %v203 = vld [vmem:[#allocation6 + $0x78] sm:$0xff]
    %v204 = vld [vmem:[#allocation6 + $0x80] sm:$0xff]
    %v205 = vld [vmem:[#allocation6 + $0x88] sm:$0xff]
    %v206 = vld [vmem:[#allocation6 + $0x90] sm:$0xff]
    %v207 = vld [vmem:[#allocation6 + $0x98] sm:$0xff]
    %v208 = vld [vmem:[#allocation6 + $0xa0] sm:$0xff]
    %v209 = vld [vmem:[#allocation6 + $0xa8] sm:$0xff]
    %v210 = vld [vmem:[#allocation6 + $0xb0] sm:$0xff]
    %v211 = vld [vmem:[#allocation6 + $0xb8] sm:$0xff]
    %v212 = vld [vmem:[#allocation6 + $0xc0] sm:$0xff]
    %v213 = vld [vmem:[#allocation6 + $0xc8] sm:$0xff]
    %v214 = vld [vmem:[#allocation6 + $0xd0] sm:$0xff]
    %v215 = vld [vmem:[#allocation6 + $0xd8] sm:$0xff]
    %v216 = vld [vmem:[#allocation6 + $0xe0] sm:$0xff]
    %v217 = vld [vmem:[#allocation6 + $0xe8] sm:$0xff]
    %v218 = vld [vmem:[#allocation6 + $0xf0] sm:$0xff]
    %v219 = vld [vmem:[#allocation6 + $0xf8] sm:$0xff]
    %v220 = vld [vmem:[#allocation6 + $0x100] sm:$0xff]
    %v221 = vld [vmem:[#allocation6 + $0x108] sm:$0xff]
    %v222 = vld [vmem:[#allocation6 + $0x110] sm:$0xff]
    %v223 = vld [vmem:[#allocation6 + $0x118] sm:$0xff]
    %v224 = vld [vmem:[#allocation6 + $0x120] sm:$0xff]
    %v225 = vld [vmem:[#allocation6 + $0x128] sm:$0xff]
    %v226 = vld [vmem:[#allocation6 + $0x130] sm:$0xff]
    %v227 = vld [vmem:[#allocation6 + $0x138] sm:$0xff]
    %v228 = vld [vmem:[#allocation6 + $0x140] sm:$0xff]
    %v229 = vld [vmem:[#allocation6 + $0x148] sm:$0xff]
    %v230 = vld [vmem:[#allocation6 + $0x150] sm:$0xff]
    %v231 = vld [vmem:[#allocation6 + $0x158] sm:$0xff]
    %v232 = vld [vmem:[#allocation6 + $0x160] sm:$0xff]
    %v233 = vld [vmem:[#allocation6 + $0x168] sm:$0xff]
    %v234 = vld [vmem:[#allocation6 + $0x170] sm:$0xff]
    %v235 = vld [vmem:[#allocation6 + $0x178] sm:$0xff]
    %v236 = vld [vmem:[#allocation6 + $0x180] sm:$0xff]
    %v237 = vld [vmem:[#allocation6 + $0x188] sm:$0xff]
    %v238 = vld [vmem:[#allocation6 + $0x190] sm:$0xff]
    %v239 = vld [vmem:[#allocation6 + $0x198] sm:$0xff]
    %v240 = vld [vmem:[#allocation6 + $0x1a0] sm:$0xff]
    %v241 = vld [vmem:[#allocation6 + $0x1a8] sm:$0xff]
    %v242 = vld [vmem:[#allocation6 + $0x1b0] sm:$0xff]
    %v243 = vld [vmem:[#allocation6 + $0x1b8] sm:$0xff]
    %v244 = vld [vmem:[#allocation6 + $0x1c0] sm:$0xff]
    %v245 = vld [vmem:[#allocation6 + $0x1c8] sm:$0xff]
    %v246 = vld [vmem:[#allocation6 + $0x1d0] sm:$0xff]
    %v247 = vld [vmem:[#allocation6 + $0x1d8] sm:$0xff]
    %v248 = vld [vmem:[#allocation6 + $0x1e0] sm:$0xff]
    %v249 = vld [vmem:[#allocation6 + $0x1e8] sm:$0xff]
    %v250 = vld [vmem:[#allocation6 + $0x1f0] sm:$0xff]
    %v251 = vld [vmem:[#allocation6 + $0x1f8] sm:$0xff]
    %v252 = vld [vmem:[#allocation6 + $0x200] sm:$0xff]
    %v253 = vld [vmem:[#allocation6 + $0x208] sm:$0xff]
    %v254 = vld [vmem:[#allocation6 + $0x210] sm:$0xff]
    %v255 = vld [vmem:[#allocation6 + $0x218] sm:$0xff]
    %v256 = vld [vmem:[#allocation6 + $0x220] sm:$0xff]
    %v257 = vld [vmem:[#allocation6 + $0x228] sm:$0xff]
    %v258 = vld [vmem:[#allocation6 + $0x230] sm:$0xff]
    %v259 = vld [vmem:[#allocation6 + $0x238] sm:$0xff]
    %v260 = vld [vmem:[#allocation6 + $0x240] sm:$0xff]
    %v261 = vld [vmem:[#allocation6 + $0x248] sm:$0xff]
    %v262 = vld [vmem:[#allocation6 + $0x250] sm:$0xff]
    %v263 = vld [vmem:[#allocation6 + $0x258] sm:$0xff]
    %v264 = vld [vmem:[#allocation6 + $0x260] sm:$0xff]
    %v265 = vld [vmem:[#allocation6 + $0x268] sm:$0xff]
    %v266 = vld [vmem:[#allocation6 + $0x270] sm:$0xff]
    %v267 = vld [vmem:[#allocation6 + $0x278] sm:$0xff]
    %v268 = vld [vmem:[#allocation6 + $0x280] sm:$0xff]
    %v269 = vld [vmem:[#allocation6 + $0x288] sm:$0xff]
    %v270 = vld [vmem:[#allocation6 + $0x290] sm:$0xff]
    %v271 = vld [vmem:[#allocation6 + $0x298] sm:$0xff]
    %v272 = vld [vmem:[#allocation6 + $0x2a0] sm:$0xff]
    %v273 = vld [vmem:[#allocation6 + $0x2a8] sm:$0xff]
    %v274 = vld [vmem:[#allocation6 + $0x2b0] sm:$0xff]
    %v275 = vld [vmem:[#allocation6 + $0x2b8] sm:$0xff]
    %v276 = vld [vmem:[#allocation6 + $0x2c0] sm:$0xff]
    %v277 = vld [vmem:[#allocation6 + $0x2c8] sm:$0xff]
    %v278 = vld [vmem:[#allocation6 + $0x2d0] sm:$0xff]
    %v279 = vld [vmem:[#allocation6 + $0x2d8] sm:$0xff]
    %v280 = vld [vmem:[#allocation6 + $0x2e0] sm:$0xff]
    %v281 = vld [vmem:[#allocation6 + $0x2e8] sm:$0xff]
    %v282 = vld [vmem:[#allocation6 + $0x2f0] sm:$0xff]
    %v283 = vld [vmem:[#allocation6 + $0x2f8] sm:$0xff]
    %v284 = vld [vmem:[#allocation6 + $0x300] sm:$0xff]
    %v285 = vld [vmem:[#allocation6 + $0x308] sm:$0xff]
    %v286 = vld [vmem:[#allocation6 + $0x310] sm:$0xff]
    %v287 = vld [vmem:[#allocation6 + $0x318] sm:$0xff]
    %v288 = vld [vmem:[#allocation6 + $0x320] sm:$0xff]
    %v289 = vld [vmem:[#allocation6 + $0x328] sm:$0xff]
    %v290 = vld [vmem:[#allocation6 + $0x330] sm:$0xff]
    %v291 = vld [vmem:[#allocation6 + $0x338] sm:$0xff]
    %v292 = vld [vmem:[#allocation6 + $0x340] sm:$0xff]
    %v293 = vld [vmem:[#allocation6 + $0x348] sm:$0xff]
    %v294 = vld [vmem:[#allocation6 + $0x350] sm:$0xff]
    %v295 = vld [vmem:[#allocation6 + $0x358] sm:$0xff]
    %v296 = vld [vmem:[#allocation6 + $0x360] sm:$0xff]
    %v297 = vld [vmem:[#allocation6 + $0x368] sm:$0xff]
    %v298 = vld [vmem:[#allocation6 + $0x370] sm:$0xff]
    %v299 = vld [vmem:[#allocation6 + $0x378] sm:$0xff]
    %v300 = vld [vmem:[#allocation6 + $0x380] sm:$0xff]
    %v301 = vld [vmem:[#allocation6 + $0x388] sm:$0xff]
    %v302 = vld [vmem:[#allocation6 + $0x390] sm:$0xff]
    %v303 = vld [vmem:[#allocation6 + $0x398] sm:$0xff]
    %v304 = vld [vmem:[#allocation6 + $0x3a0] sm:$0xff]
    %v305 = vld [vmem:[#allocation6 + $0x3a8] sm:$0xff]
    %v306 = vld [vmem:[#allocation6 + $0x3b0] sm:$0xff]
    %v307 = vld [vmem:[#allocation6 + $0x3b8] sm:$0xff]
    %v308 = vld [vmem:[#allocation6 + $0x3c0] sm:$0xff]
    %v309 = vld [vmem:[#allocation6 + $0x3c8] sm:$0xff]
    %v310 = vld [vmem:[#allocation6 + $0x3d0] sm:$0xff]
    %v311 = vld [vmem:[#allocation6 + $0x3d8] sm:$0xff]
    %v312 = vld [vmem:[#allocation6 + $0x3e0] sm:$0xff]
    %v313 = vld [vmem:[#allocation6 + $0x3e8] sm:$0xff]
    %v314 = vld [vmem:[#allocation6 + $0x3f0] sm:$0xff]
    %v315 = vld [vmem:[#allocation6 + $0x3f8] sm:$0xff]
    %v316 = vld [vmem:[#allocation12 + $0x2] sm:$0xf]
    %v318 = vperm.slane %v316, 0
    %v319 = vperm.slane %v316, 1
    %v320 = vperm.slane %v316, 2
    %v321 = vperm.slane %v316, 3
    %326 = vmatpush.msra.mxu0 %v248
    %327 = vmatpush.msra.mxu0 %v244
    %328 = vmatpush.msra.mxu0 %v240
    %329 = vmatpush.msra.mxu0 %v236
    %330 = vmatpush.msra.mxu0 %v232
    %331 = vmatpush.msra.mxu0 %v228
    %332 = vmatpush.msra.mxu0 %v224
    %333 = vmatpush.msra.mxu0 %v220
    %334 = vmatpush.msra.mxu0 %v216
    %335 = vmatpush.msra.mxu0 %v212
    %336 = vmatpush.msra.mxu0 %v208
    %337 = vmatpush.msra.mxu0 %v204
    %338 = vmatpush.msra.mxu0 %v200
    %339 = vmatpush.msra.mxu0 %v196
    %340 = vmatpush.msra.mxu0 %v192
    %341 = vmatpush.msra.mxu0 %v188
    %342 = vmatmul.f32.gmra.mxu0 %v186
    %v343 = vpop.f32.mrf.mxu0
    %v344 = vadd.f32 %v318, %v343
    %345 = vdwg.mxu0
    %346 = vmatpush.msra.mxu0 %v312
    %347 = vmatpush.msra.mxu0 %v308
    %348 = vmatpush.msra.mxu0 %v304
    %349 = vmatpush.msra.mxu0 %v300
    %350 = vmatpush.msra.mxu0 %v296
    %351 = vmatpush.msra.mxu0 %v292
    %352 = vmatpush.msra.mxu0 %v288
    %353 = vmatpush.msra.mxu0 %v284
    %354 = vmatpush.msra.mxu0 %v280
    %355 = vmatpush.msra.mxu0 %v276
    %356 = vmatpush.msra.mxu0 %v272
    %357 = vmatpush.msra.mxu0 %v268
    %358 = vmatpush.msra.mxu0 %v264
    %359 = vmatpush.msra.mxu0 %v260
    %360 = vmatpush.msra.mxu0 %v256
    %361 = vmatpush.msra.mxu0 %v252
    %362 = vmatmul.f32.gmra.mxu0 %v187
    %v363 = vpop.f32.mrf.mxu0
    %v364 = vadd.f32 %v344, %v363
    %365 = vdwg.mxu0
    %366 = vmatpush.msra.mxu0 %v249
    %367 = vmatpush.msra.mxu0 %v245
    %368 = vmatpush.msra.mxu0 %v241
    %369 = vmatpush.msra.mxu0 %v237
    %370 = vmatpush.msra.mxu0 %v233
    %371 = vmatpush.msra.mxu0 %v229
    %372 = vmatpush.msra.mxu0 %v225
    %373 = vmatpush.msra.mxu0 %v221
    %374 = vmatpush.msra.mxu0 %v217
    %375 = vmatpush.msra.mxu0 %v213
    %376 = vmatpush.msra.mxu0 %v209
    %377 = vmatpush.msra.mxu0 %v205
    %378 = vmatpush.msra.mxu0 %v201
    %379 = vmatpush.msra.mxu0 %v197
    %380 = vmatpush.msra.mxu0 %v193
    %381 = vmatpush.msra.mxu0 %v189
    %382 = vmatmul.f32.gmra.mxu0 %v186
    %v383 = vpop.f32.mrf.mxu0
    %v384 = vadd.f32 %v319, %v383
    %385 = vdwg.mxu0
    %386 = vmatpush.msra.mxu0 %v313
    %387 = vmatpush.msra.mxu0 %v309
    %388 = vmatpush.msra.mxu0 %v305
    %389 = vmatpush.msra.mxu0 %v301
    %390 = vmatpush.msra.mxu0 %v297
    %391 = vmatpush.msra.mxu0 %v293
    %392 = vmatpush.msra.mxu0 %v289
    %393 = vmatpush.msra.mxu0 %v285
    %394 = vmatpush.msra.mxu0 %v281
    %395 = vmatpush.msra.mxu0 %v277
    %396 = vmatpush.msra.mxu0 %v273
    %397 = vmatpush.msra.mxu0 %v269
    %398 = vmatpush.msra.mxu0 %v265
    %399 = vmatpush.msra.mxu0 %v261
    %400 = vmatpush.msra.mxu0 %v257
    %401 = vmatpush.msra.mxu0 %v253
    %402 = vmatmul.f32.gmra.mxu0 %v187
    %v403 = vpop.f32.mrf.mxu0
    %v404 = vadd.f32 %v384, %v403
    %405 = vdwg.mxu0
    %406 = vmatpush.msra.mxu0 %v250
    %407 = vmatpush.msra.mxu0 %v246
    %408 = vmatpush.msra.mxu0 %v242
    %409 = vmatpush.msra.mxu0 %v238
    %410 = vmatpush.msra.mxu0 %v234
    %411 = vmatpush.msra.mxu0 %v230
    %412 = vmatpush.msra.mxu0 %v226
    %413 = vmatpush.msra.mxu0 %v222
    %414 = vmatpush.msra.mxu0 %v218
    %415 = vmatpush.msra.mxu0 %v214
    %416 = vmatpush.msra.mxu0 %v210
    %417 = vmatpush.msra.mxu0 %v206
    %418 = vmatpush.msra.mxu0 %v202
    %419 = vmatpush.msra.mxu0 %v198
    %420 = vmatpush.msra.mxu0 %v194
    %421 = vmatpush.msra.mxu0 %v190
    %422 = vmatmul.f32.gmra.mxu0 %v186
    %v423 = vpop.f32.mrf.mxu0
    %v424 = vadd.f32 %v320, %v423
    %425 = vdwg.mxu0
    %426 = vmatpush.msra.mxu0 %v314
    %427 = vmatpush.msra.mxu0 %v310
    %428 = vmatpush.msra.mxu0 %v306
    %429 = vmatpush.msra.mxu0 %v302
    %430 = vmatpush.msra.mxu0 %v298
    %431 = vmatpush.msra.mxu0 %v294
    %432 = vmatpush.msra.mxu0 %v290
    %433 = vmatpush.msra.mxu0 %v286
    %434 = vmatpush.msra.mxu0 %v282
    %435 = vmatpush.msra.mxu0 %v278
    %436 = vmatpush.msra.mxu0 %v274
    %437 = vmatpush.msra.mxu0 %v270
    %438 = vmatpush.msra.mxu0 %v266
    %439 = vmatpush.msra.mxu0 %v262
    %440 = vmatpush.msra.mxu0 %v258
    %441 = vmatpush.msra.mxu0 %v254
    %442 = vmatmul.f32.gmra.mxu0 %v187
    %v443 = vpop.f32.mrf.mxu0
    %v444 = vadd.f32 %v424, %v443
    %445 = vdwg.mxu0
    %446 = vmatpush.msra.mxu0 %v251
    %447 = vmatpush.msra.mxu0 %v247
    %448 = vmatpush.msra.mxu0 %v243
    %449 = vmatpush.msra.mxu0 %v239
    %450 = vmatpush.msra.mxu0 %v235
    %451 = vmatpush.msra.mxu0 %v231
    %452 = vmatpush.msra.mxu0 %v227
    %453 = vmatpush.msra.mxu0 %v223
    %454 = vmatpush.msra.mxu0 %v219
    %455 = vmatpush.msra.mxu0 %v215
    %456 = vmatpush.msra.mxu0 %v211
    %457 = vmatpush.msra.mxu0 %v207
    %458 = vmatpush.msra.mxu0 %v203
    %459 = vmatpush.msra.mxu0 %v199
    %460 = vmatpush.msra.mxu0 %v195
    %461 = vmatpush.msra.mxu0 %v191
    %462 = vmatmul.f32.gmra.mxu0 %v186
    %v463 = vpop.f32.mrf.mxu0
    %v464 = vadd.f32 %v321, %v463
    %465 = vdwg.mxu0
    %466 = vmatpush.msra.mxu0 %v315
    %467 = vmatpush.msra.mxu0 %v311
    %468 = vmatpush.msra.mxu0 %v307
    %469 = vmatpush.msra.mxu0 %v303
    %470 = vmatpush.msra.mxu0 %v299
    %471 = vmatpush.msra.mxu0 %v295
    %472 = vmatpush.msra.mxu0 %v291
    %473 = vmatpush.msra.mxu0 %v287
    %474 = vmatpush.msra.mxu0 %v283
    %475 = vmatpush.msra.mxu0 %v279
    %476 = vmatpush.msra.mxu0 %v275
    %477 = vmatpush.msra.mxu0 %v271
    %478 = vmatpush.msra.mxu0 %v267
    %479 = vmatpush.msra.mxu0 %v263
    %480 = vmatpush.msra.mxu0 %v259
    %481 = vmatpush.msra.mxu0 %v255
    %482 = vmatmul.f32.gmra.mxu0 %v187
    %v483 = vpop.f32.mrf.mxu0
    %v484 = vadd.f32 %v464, %v483
    %485 = vdwg.mxu0
    %v486 = vmax.f32 %v364, 0.0
    %v487 = vmax.f32 %v404, 0.0
    %v488 = vmax.f32 %v444, 0.0
    %v489 = vmax.f32 %v484, 0.0
    %v490 = vld [vmem:[#allocation7] sm:$0xff]
    %v491 = vld [vmem:[#allocation7 + $0x8] sm:$0xff]
    %v492 = vld [vmem:[#allocation7 + $0x10] sm:$0xff]
    %v493 = vld [vmem:[#allocation7 + $0x18] sm:$0xff]
    %v494 = vld [vmem:[#allocation7 + $0x20] sm:$0xff]
    %v495 = vld [vmem:[#allocation7 + $0x28] sm:$0xff]
    %v496 = vld [vmem:[#allocation7 + $0x30] sm:$0xff]
    %v497 = vld [vmem:[#allocation7 + $0x38] sm:$0xff]
    %v498 = vld [vmem:[#allocation7 + $0x40] sm:$0xff]
    %v499 = vld [vmem:[#allocation7 + $0x48] sm:$0xff]
    %v500 = vld [vmem:[#allocation7 + $0x50] sm:$0xff]
    %v501 = vld [vmem:[#allocation7 + $0x58] sm:$0xff]
    %v502 = vld [vmem:[#allocation7 + $0x60] sm:$0xff]
    %v503 = vld [vmem:[#allocation7 + $0x68] sm:$0xff]
    %v504 = vld [vmem:[#allocation7 + $0x70] sm:$0xff]
    %v505 = vld [vmem:[#allocation7 + $0x78] sm:$0xff]
    %v506 = vld [vmem:[#allocation7 + $0x80] sm:$0xff]
    %v507 = vld [vmem:[#allocation7 + $0x88] sm:$0xff]
    %v508 = vld [vmem:[#allocation7 + $0x90] sm:$0xff]
    %v509 = vld [vmem:[#allocation7 + $0x98] sm:$0xff]
    %v510 = vld [vmem:[#allocation7 + $0xa0] sm:$0xff]
    %v511 = vld [vmem:[#allocation7 + $0xa8] sm:$0xff]
    %v512 = vld [vmem:[#allocation7 + $0xb0] sm:$0xff]
    %v513 = vld [vmem:[#allocation7 + $0xb8] sm:$0xff]
    %v514 = vld [vmem:[#allocation7 + $0xc0] sm:$0xff]
    %v515 = vld [vmem:[#allocation7 + $0xc8] sm:$0xff]
    %v516 = vld [vmem:[#allocation7 + $0xd0] sm:$0xff]
    %v517 = vld [vmem:[#allocation7 + $0xd8] sm:$0xff]
    %v518 = vld [vmem:[#allocation7 + $0xe0] sm:$0xff]
    %v519 = vld [vmem:[#allocation7 + $0xe8] sm:$0xff]
    %v520 = vld [vmem:[#allocation7 + $0xf0] sm:$0xff]
    %v521 = vld [vmem:[#allocation7 + $0xf8] sm:$0xff]
    %v522 = vld [vmem:[#allocation7 + $0x100] sm:$0xff]
    %v523 = vld [vmem:[#allocation7 + $0x108] sm:$0xff]
    %v524 = vld [vmem:[#allocation7 + $0x110] sm:$0xff]
    %v525 = vld [vmem:[#allocation7 + $0x118] sm:$0xff]
    %v526 = vld [vmem:[#allocation7 + $0x120] sm:$0xff]
    %v527 = vld [vmem:[#allocation7 + $0x128] sm:$0xff]
    %v528 = vld [vmem:[#allocation7 + $0x130] sm:$0xff]
    %v529 = vld [vmem:[#allocation7 + $0x138] sm:$0xff]
    %v530 = vld [vmem:[#allocation7 + $0x140] sm:$0xff]
    %v531 = vld [vmem:[#allocation7 + $0x148] sm:$0xff]
    %v532 = vld [vmem:[#allocation7 + $0x150] sm:$0xff]
    %v533 = vld [vmem:[#allocation7 + $0x158] sm:$0xff]
    %v534 = vld [vmem:[#allocation7 + $0x160] sm:$0xff]
    %v535 = vld [vmem:[#allocation7 + $0x168] sm:$0xff]
    %v536 = vld [vmem:[#allocation7 + $0x170] sm:$0xff]
    %v537 = vld [vmem:[#allocation7 + $0x178] sm:$0xff]
    %v538 = vld [vmem:[#allocation7 + $0x180] sm:$0xff]
    %v539 = vld [vmem:[#allocation7 + $0x188] sm:$0xff]
    %v540 = vld [vmem:[#allocation7 + $0x190] sm:$0xff]
    %v541 = vld [vmem:[#allocation7 + $0x198] sm:$0xff]
    %v542 = vld [vmem:[#allocation7 + $0x1a0] sm:$0xff]
    %v543 = vld [vmem:[#allocation7 + $0x1a8] sm:$0xff]
    %v544 = vld [vmem:[#allocation7 + $0x1b0] sm:$0xff]
    %v545 = vld [vmem:[#allocation7 + $0x1b8] sm:$0xff]
    %v546 = vld [vmem:[#allocation7 + $0x1c0] sm:$0xff]
    %v547 = vld [vmem:[#allocation7 + $0x1c8] sm:$0xff]
    %v548 = vld [vmem:[#allocation7 + $0x1d0] sm:$0xff]
    %v549 = vld [vmem:[#allocation7 + $0x1d8] sm:$0xff]
    %v550 = vld [vmem:[#allocation7 + $0x1e0] sm:$0xff]
    %v551 = vld [vmem:[#allocation7 + $0x1e8] sm:$0xff]
    %v552 = vld [vmem:[#allocation7 + $0x1f0] sm:$0xff]
    %v553 = vld [vmem:[#allocation7 + $0x1f8] sm:$0xff]
    %v554 = vld [vmem:[#allocation12 + $0x6] sm:$0x1]
    %v556 = vperm.slane %v554, 0
    %558 = vmatpush.msra.mxu0 %v505
    %559 = vmatpush.msra.mxu0 %v504
    %560 = vmatpush.msra.mxu0 %v503
    %561 = vmatpush.msra.mxu0 %v502
    %562 = vmatpush.msra.mxu0 %v501
    %563 = vmatpush.msra.mxu0 %v500
    %564 = vmatpush.msra.mxu0 %v499
    %565 = vmatpush.msra.mxu0 %v498
    %566 = vmatpush.msra.mxu0 %v497
    %567 = vmatpush.msra.mxu0 %v496
    %568 = vmatpush.msra.mxu0 %v495
    %569 = vmatpush.msra.mxu0 %v494
    %570 = vmatpush.msra.mxu0 %v493
    %571 = vmatpush.msra.mxu0 %v492
    %572 = vmatpush.msra.mxu0 %v491
    %573 = vmatpush.msra.mxu0 %v490
    %574 = vmatmul.f32.gmra.mxu0 %v486
    %v575 = vpop.f32.mrf.mxu0
    %v576 = vadd.f32 %v556, %v575
    %577 = vdwg.mxu0
    %578 = vmatpush.msra.mxu0 %v521
    %579 = vmatpush.msra.mxu0 %v520
    %580 = vmatpush.msra.mxu0 %v519
    %581 = vmatpush.msra.mxu0 %v518
    %582 = vmatpush.msra.mxu0 %v517
    %583 = vmatpush.msra.mxu0 %v516
    %584 = vmatpush.msra.mxu0 %v515
    %585 = vmatpush.msra.mxu0 %v514
    %586 = vmatpush.msra.mxu0 %v513
    %587 = vmatpush.msra.mxu0 %v512
    %588 = vmatpush.msra.mxu0 %v511
    %589 = vmatpush.msra.mxu0 %v510
    %590 = vmatpush.msra.mxu0 %v509
    %591 = vmatpush.msra.mxu0 %v508
    %592 = vmatpush.msra.mxu0 %v507
    %593 = vmatpush.msra.mxu0 %v506
    %594 = vmatmul.f32.gmra.mxu0 %v487
    %v595 = vpop.f32.mrf.mxu0
    %v596 = vadd.f32 %v576, %v595
    %597 = vdwg.mxu0
    %598 = vmatpush.msra.mxu0 %v537
    %599 = vmatpush.msra.mxu0 %v536
    %600 = vmatpush.msra.mxu0 %v535
    %601 = vmatpush.msra.mxu0 %v534
    %602 = vmatpush.msra.mxu0 %v533
    %603 = vmatpush.msra.mxu0 %v532
    %604 = vmatpush.msra.mxu0 %v531
    %605 = vmatpush.msra.mxu0 %v530
    %606 = vmatpush.msra.mxu0 %v529
    %607 = vmatpush.msra.mxu0 %v528
    %608 = vmatpush.msra.mxu0 %v527
    %609 = vmatpush.msra.mxu0 %v526
    %610 = vmatpush.msra.mxu0 %v525
    %611 = vmatpush.msra.mxu0 %v524
    %612 = vmatpush.msra.mxu0 %v523
    %613 = vmatpush.msra.mxu0 %v522
    %614 = vmatmul.f32.gmra.mxu0 %v488
    %v615 = vpop.f32.mrf.mxu0
    %v616 = vadd.f32 %v596, %v615
    %617 = vdwg.mxu0
    %618 = vmatpush.msra.mxu0 %v553
    %619 = vmatpush.msra.mxu0 %v552
    %620 = vmatpush.msra.mxu0 %v551
    %621 = vmatpush.msra.mxu0 %v550
    %622 = vmatpush.msra.mxu0 %v549
    %623 = vmatpush.msra.mxu0 %v548
    %624 = vmatpush.msra.mxu0 %v547
    %625 = vmatpush.msra.mxu0 %v546
    %626 = vmatpush.msra.mxu0 %v545
    %627 = vmatpush.msra.mxu0 %v544
    %628 = vmatpush.msra.mxu0 %v543
    %629 = vmatpush.msra.mxu0 %v542
    %630 = vmatpush.msra.mxu0 %v541
    %631 = vmatpush.msra.mxu0 %v540
    %632 = vmatpush.msra.mxu0 %v539
    %633 = vmatpush.msra.mxu0 %v538
    %634 = vmatmul.f32.gmra.mxu0 %v489
    %v635 = vpop.f32.mrf.mxu0
    %v636 = vadd.f32 %v616, %v635
    %637 = vdwg.mxu0
    %v638 = vmax.f32 %v636, 0.0
    %v639 = vld [vmem:[#allocation9] sm:$0xff]
    %v640 = vld [vmem:[#allocation9 + $0x8] sm:$0xff]
    %v641 = vld [vmem:[#allocation9 + $0x10] sm:$0xff]
    %v642 = vld [vmem:[#allocation9 + $0x18] sm:$0xff]
    %v643 = vld [vmem:[#allocation9 + $0x20] sm:$0xff]
    %v644 = vld [vmem:[#allocation9 + $0x28] sm:$0xff]
    %v645 = vld [vmem:[#allocation9 + $0x30] sm:$0xff]
    %v646 = vld [vmem:[#allocation9 + $0x38] sm:$0xff]
    %v647 = vld [vmem:[#allocation9 + $0x40] sm:$0xff]
    %v648 = vld [vmem:[#allocation9 + $0x48] sm:$0xff]
    %v649 = vld [vmem:[#allocation9 + $0x50] sm:$0xff]
    %v650 = vld [vmem:[#allocation9 + $0x58] sm:$0xff]
    %v651 = vld [vmem:[#allocation9 + $0x60] sm:$0xff]
    %v652 = vld [vmem:[#allocation9 + $0x68] sm:$0xff]
    %v653 = vld [vmem:[#allocation9 + $0x70] sm:$0xff]
    %v654 = vld [vmem:[#allocation9 + $0x78] sm:$0xff]
    %v655 = vld [vmem:[#allocation12 + $0x7] sm:$0x1]
    %v657 = vperm.slane %v655, 0
    %659 = vmatpush.msra.mxu0 %v654
    %660 = vmatpush.msra.mxu0 %v653
    %661 = vmatpush.msra.mxu0 %v652
    %662 = vmatpush.msra.mxu0 %v651
    %663 = vmatpush.msra.mxu0 %v650
    %664 = vmatpush.msra.mxu0 %v649
    %665 = vmatpush.msra.mxu0 %v648
    %666 = vmatpush.msra.mxu0 %v647
    %667 = vmatpush.msra.mxu0 %v646
    %668 = vmatpush.msra.mxu0 %v645
    %669 = vmatpush.msra.mxu0 %v644
    %670 = vmatpush.msra.mxu0 %v643
    %671 = vmatpush.msra.mxu0 %v642
    %672 = vmatpush.msra.mxu0 %v641
    %673 = vmatpush.msra.mxu0 %v640
    %674 = vmatpush.msra.mxu0 %v639
    %675 = vmatmul.f32.gmra.mxu0 %v638
    %v676 = vpop.f32.mrf.mxu0
    %v677 = vadd.f32 %v657, %v676
    %678 = vdwg.mxu0
    %v679 = vmax.f32 %v677, 0.0
    %v680 = vld [vmem:[#allocation10] sm:$0xff]
    %v681 = vld [vmem:[#allocation10 + $0x8] sm:$0xff]
    %v682 = vld [vmem:[#allocation10 + $0x10] sm:$0xff]
    %v683 = vld [vmem:[#allocation10 + $0x18] sm:$0xff]
    %v684 = vld [vmem:[#allocation10 + $0x20] sm:$0xff]
    %v685 = vld [vmem:[#allocation10 + $0x28] sm:$0xff]
    %v686 = vld [vmem:[#allocation10 + $0x30] sm:$0xff]
    %v687 = vld [vmem:[#allocation10 + $0x38] sm:$0xff]
    %v688 = vld [vmem:[#allocation10 + $0x40] sm:$0xff]
    %v689 = vld [vmem:[#allocation10 + $0x48] sm:$0xff]
    %v690 = vld [vmem:[#allocation10 + $0x50] sm:$0xff]
    %v691 = vld [vmem:[#allocation10 + $0x58] sm:$0xff]
    %v692 = vld [vmem:[#allocation10 + $0x60] sm:$0xff]
    %v693 = vld [vmem:[#allocation10 + $0x68] sm:$0xff]
    %v694 = vld [vmem:[#allocation10 + $0x70] sm:$0xff]
    %v695 = vld [vmem:[#allocation10 + $0x78] sm:$0xff]
    %v696 = vld [vmem:[#allocation12 + $0x8] sm:$0x1]
    %v698 = vperm.slane %v696, 0
    %700 = vmatpush.msra.mxu0 %v695
    %701 = vmatpush.msra.mxu0 %v694
    %702 = vmatpush.msra.mxu0 %v693
    %703 = vmatpush.msra.mxu0 %v692
    %704 = vmatpush.msra.mxu0 %v691
    %705 = vmatpush.msra.mxu0 %v690
    %706 = vmatpush.msra.mxu0 %v689
    %707 = vmatpush.msra.mxu0 %v688
    %708 = vmatpush.msra.mxu0 %v687
    %709 = vmatpush.msra.mxu0 %v686
    %710 = vmatpush.msra.mxu0 %v685
    %711 = vmatpush.msra.mxu0 %v684
    %712 = vmatpush.msra.mxu0 %v683
    %713 = vmatpush.msra.mxu0 %v682
    %714 = vmatpush.msra.mxu0 %v681
    %715 = vmatpush.msra.mxu0 %v680
    %716 = vmatmul.f32.gmra.mxu0 %v679
    %v717 = vpop.f32.mrf.mxu0
    %v718 = vadd.f32 %v698, %v717
    %719 = vdwg.mxu0
    %720 = vst [vmem:[%s7] sm:$0xff] %v718
    // Predicated region
    $region58: #{forward.1} parent=1 // pred_check
      _
    $region59: #{forward.1} parent=1 // pred_check_branch
      %722 = sbr.rel (0) target = $region61
    $region60: #{forward.1} parent=1 // pred_region
      _
    $region61: #{forward.1} parent=1 // pred_fallthru
      _
    // Predicated region
    $region62: #{forward.1} parent=1 // pred_check
      _
    $region63: #{forward.1} parent=1 // pred_check_branch
      %724 = sbr.rel (0) target = $region65
    $region64: #{forward.1} parent=1 // pred_region
      _
    $region65: #{forward.1} parent=1 // pred_fallthru
      _
    %725 = vsyncpa [#allocation3], 1
    %726 = vsyncpa [#allocation5], 1
    %727 = vsyncpa [#allocation8], 1
    %728 = vsyncpa [#allocation11], 1

</llo_original>
